<compile_context>
chip_gen: v7x
topology: tpu7x:2x2x1
jax: 0.10.0
libtpu: 0.0.40
codegen_flags: <defaults>
</compile_context>

<pallas_src>
import jax
import jax.numpy as jnp
import numpy as np
from jax.experimental import pallas as pl
from jax.experimental.pallas import tpu as pltpu

# ---------------- model dimensions (small, deterministic) ----------------
BATCH = 2
OBS_DIM = 16
HIDDEN = 32            # backbone.output_dim (latent_dim)
ACTION_DIM = 4
NUM_BINS = 100         # the fixed "100" in ActorDiscrete100
PADDED_BINS = 128      # lane-dense padding of the 100 bins
OUT_W = ACTION_DIM * PADDED_BINS          # 512
NEG_INF = jnp.float32(-1e30)              # pad-bin bias -> exp() == 0 exactly

# Last-layer matmul chunking: 2 actions (256 lanes) per chunk keeps the v6e/v7x MXU
# N-dimension full while bounding live intermediates; still fine on v5e (2x128 passes).
ACTIONS_PER_CHUNK = 2 if ACTION_DIM % 2 == 0 else 1
CHUNK_W = ACTIONS_PER_CHUNK * PADDED_BINS
NUM_CHUNKS = ACTION_DIM // ACTIONS_PER_CHUNK


def _align8(n: int) -> int:
    return ((n + 7) // 8) * 8


# ---- small-parameter buffer (w1, b1, w2, b2): shape (SP_ROWS, HIDDEN) -------------
# All row starts are multiples of 8 so every in-kernel slice is sublane-aligned.
ROW_W1 = 0
ROW_B1 = _align8(ROW_W1 + OBS_DIM)        # 16
ROW_W2 = _align8(ROW_B1 + 1)              # 24
ROW_B2 = _align8(ROW_W2 + HIDDEN)         # 56
SP_ROWS = _align8(ROW_B2 + 1)             # 64     -> (64, 32) f32 = 8 KB

# ---- wide-parameter buffer (w3, b3, bins padded to 128): shape (W3_ROWS, OUT_W) ----
ROW_W3 = 0
ROW_B3 = _align8(ROW_W3 + HIDDEN)         # 32
W3_ROWS = _align8(ROW_B3 + 1)             # 40     -> (40, 512) f32 = 80 KB


def actor_discrete100_kernel(obs_ref, sp_ref, w3_ref, out_ref):
    """Fused backbone MLP + chunked last Linear + per-action softmax.

    obs_ref : (bt, OBS_DIM)        f32
    sp_ref  : (SP_ROWS, HIDDEN)    f32  -- w1/b1/w2/b2 packed, 8-aligned rows
    w3_ref  : (W3_ROWS, OUT_W)     f32  -- padded w3/b3 packed, 8-aligned rows
    out_ref : (bt, ACTION_DIM*128) f32  -- lane-dense; pad bins hold exact 0
    """
    x = obs_ref[...]

    # Static, aligned views into the packed parameter buffers (zero-cost slicing).
    w1 = sp_ref[ROW_W1:ROW_W1 + OBS_DIM, :]
    b1 = sp_ref[ROW_B1:ROW_B1 + 1, :]
    w2 = sp_ref[ROW_W2:ROW_W2 + HIDDEN, :]
    b2 = sp_ref[ROW_B2:ROW_B2 + 1, :]

    # Backbone: Linear -> ReLU -> Linear -> ReLU
    h1 = jnp.maximum(jnp.dot(x, w1, preferred_element_type=jnp.float32) + b1, 0.0)
    h2 = jnp.maximum(jnp.dot(h1, w2, preferred_element_type=jnp.float32) + b2, 0.0)

    # Last Linear + softmax, 256 lanes (2 actions) at a time.  Static unroll: both
    # loop counts are tiny compile-time constants.
    for c in range(NUM_CHUNKS):
        clo = c * CHUNK_W
        w3c = w3_ref[ROW_W3:ROW_W3 + HIDDEN, clo:clo + CHUNK_W]
        b3c = w3_ref[ROW_B3:ROW_B3 + 1, clo:clo + CHUNK_W]
        logits_c = jnp.dot(h2, w3c, preferred_element_type=jnp.float32) + b3c

        for a in range(ACTIONS_PER_CHUNK):
            slo = a * PADDED_BINS
            seg = logits_c[:, slo:slo + PADDED_BINS]
            # Pad bins carry logit -1e30, so exp(seg - m) is exactly 0 there and the
            # normalization only sees the 100 real bins.
            m = jnp.max(seg, axis=-1, keepdims=True)
            e = jnp.exp(seg - m)
            s = jnp.sum(e, axis=-1, keepdims=True)
            r = pl.reciprocal(s, approx=True)      # EUP vrcp (free slot)
            r = r * (2.0 - s * r)                  # one Newton step -> ~f32 exact
            # Direct store to a static, 128-lane-aligned slice: unmasked vst,
            # no concatenate relayout, minimal live vregs.
            out_ref[:, clo + slo: clo + slo + PADDED_BINS] = e * r


def actor_discrete100_forward(obs, small_params, w3_params, *, batch_tile=256):
    """Wrapper: batch grid (parallel across TCs), lane-dense kernel output, then
    reshape/slice back to the module's (B, ACTION_DIM, 100) result.

    batch_tile: 256 is a good tile for v6e/v7x (256x256 MXU); use 128 on v5e.  On
    v7x pick batch_tile <= B // 2 at moderate batches so grid >= 2 engages both
    TensorCores.  When B is not a multiple of the tile, the batch is zero-padded up
    to the next multiple (and the output sliced) instead of degrading to one tile.
    """
    B = obs.shape[0]
    if B <= batch_tile:
        bt = B                                  # single full-array tile (B=2 demo)
        b_pad = B
    else:
        bt = max(8, (batch_tile // 8) * 8)      # tile must be 8-sublane aligned
        b_pad = ((B + bt - 1) // bt) * bt
        if b_pad != B:
            obs = jnp.pad(obs, ((0, b_pad - B), (0, 0)))
    grid = (b_pad // bt,)

    out2d = pl.pallas_call(
        actor_discrete100_kernel,
        out_shape=jax.ShapeDtypeStruct((b_pad, OUT_W), jnp.float32),
        grid=grid,
        in_specs=[
            pl.BlockSpec((bt, OBS_DIM), lambda i: (i, 0)),          # obs batch tile
            pl.BlockSpec((SP_ROWS, HIDDEN), lambda i: (0, 0)),      # small params (8 KB)
            pl.BlockSpec((W3_ROWS, OUT_W), lambda i: (0, 0)),       # w3/b3 slab (80 KB)
        ],
        out_specs=pl.BlockSpec((bt, OUT_W), lambda i: (i, 0)),
        compiler_params=pltpu.CompilerParams(
            dimension_semantics=("parallel",)),
    )(obs, small_params, w3_params)

    # Cheap wrapper-side layout plumbing: drop pad bins (and padded batch rows).
    out = out2d.reshape(b_pad, ACTION_DIM, PADDED_BINS)[:, :, :NUM_BINS]
    return out[:B] if b_pad != B else out


def init_params(key):
    """Deterministic synthetic parameters.

    Returns:
      small  : (SP_ROWS, HIDDEN) f32 buffer with w1/b1/w2/b2.
      w3buf  : (W3_ROWS, OUT_W)  f32 buffer with bin-padded w3/b3.
      flat   : (w1, b1, w2, b2, w3_flat, b3_flat) un-padded params for the reference.
    """
    k1, k2, k3, k4, k5, k6 = jax.random.split(key, 6)
    w1 = jax.random.normal(k1, (OBS_DIM, HIDDEN), jnp.float32) * 0.1
    b1 = jax.random.normal(k2, (HIDDEN,), jnp.float32) * 0.01
    w2 = jax.random.normal(k3, (HIDDEN, HIDDEN), jnp.float32) * 0.1
    b2 = jax.random.normal(k4, (HIDDEN,), jnp.float32) * 0.01
    w3_flat = jax.random.normal(k5, (HIDDEN, ACTION_DIM * NUM_BINS), jnp.float32) * 0.1
    b3_flat = jax.random.normal(k6, (ACTION_DIM * NUM_BINS,), jnp.float32) * 0.01

    # Small-parameter buffer (narrow: HIDDEN lanes only).
    small = jnp.zeros((SP_ROWS, HIDDEN), jnp.float32)
    small = small.at[ROW_W1:ROW_W1 + OBS_DIM, :].set(w1)
    small = small.at[ROW_B1, :].set(b1)
    small = small.at[ROW_W2:ROW_W2 + HIDDEN, :].set(w2)
    small = small.at[ROW_B2, :].set(b2)

    # Pad the last layer 100 -> 128 bins per action: zero weight columns,
    # -1e30 bias so softmax mass cannot leak into pad bins.
    w3_pad = jnp.zeros((HIDDEN, OUT_W), jnp.float32)
    b3_pad = jnp.full((OUT_W,), NEG_INF, jnp.float32)
    for a in range(ACTION_DIM):
        w3_pad = w3_pad.at[:, a * PADDED_BINS:a * PADDED_BINS + NUM_BINS].set(
            w3_flat[:, a * NUM_BINS:(a + 1) * NUM_BINS])
        b3_pad = b3_pad.at[a * PADDED_BINS:a * PADDED_BINS + NUM_BINS].set(
            b3_flat[a * NUM_BINS:(a + 1) * NUM_BINS])

    w3buf = jnp.zeros((W3_ROWS, OUT_W), jnp.float32)
    w3buf = w3buf.at[ROW_W3:ROW_W3 + HIDDEN, :].set(w3_pad)
    w3buf = w3buf.at[ROW_B3, :].set(b3_pad)

    return small, w3buf, (w1, b1, w2, b2, w3_flat, b3_flat)


def reference_forward(obs, flat_params):
    """Pure-JAX reference replicating the PyTorch forward exactly (no padding)."""
    w1, b1, w2, b2, w3_flat, b3_flat = flat_params
    h1 = jnp.maximum(obs @ w1 + b1, 0.0)
    h2 = jnp.maximum(h1 @ w2 + b2, 0.0)
    logits = (h2 @ w3_flat + b3_flat).reshape(obs.shape[0], -1, NUM_BINS)
    return jax.nn.softmax(logits, axis=-1)


if __name__ == "__main__":
    key = jax.random.PRNGKey(0)
    k_obs, k_par = jax.random.split(key)
    obs = jax.random.normal(k_obs, (BATCH, OBS_DIM), jnp.float32)

    small_params, w3_params, flat_params = init_params(k_par)

    out = actor_discrete100_forward(obs, small_params, w3_params)
    out = jax.block_until_ready(out)

    ref = reference_forward(obs, flat_params)
    ref = jax.block_until_ready(ref)

    assert out.shape == (BATCH, ACTION_DIM, NUM_BINS)
    np.testing.assert_allclose(np.asarray(out), np.asarray(ref), rtol=1e-5, atol=1e-5)
    # softmax rows sum to 1 (pad bins contribute exactly 0)
    np.testing.assert_allclose(np.asarray(out).sum(-1), 1.0, rtol=1e-5, atol=1e-5)

    print("KERNEL_OK")
</pallas_src>

<mosaic_0001>
module attributes {stable_mosaic.version = 11 : i64} {
  func.func @actor_discrete100_kernel(%arg0: i32, %arg1: memref<2x16xf32, #tpu.memory_space<vmem>>, %arg2: memref<64x32xf32, #tpu.memory_space<vmem>>, %arg3: memref<40x512xf32, #tpu.memory_space<vmem>>, %arg4: memref<2x512xf32, #tpu.memory_space<vmem>>) attributes {dimension_semantics = [#tpu.dimension_semantics<parallel>], iteration_bounds = array<i64: 1>, scalar_prefetch = 0 : i64, scratch_operands = 0 : i64, tpu.core_type = #tpu.core_type<tc>, window_params = [{transform_indices = @transform_0, window_bounds = array<i64: 2, 16>}, {pipeline_mode = #tpu.pipeline_mode<synchronous>, transform_indices = @transform_1, window_bounds = array<i64: 64, 32>}, {pipeline_mode = #tpu.pipeline_mode<synchronous>, transform_indices = @transform_2, window_bounds = array<i64: 40, 512>}, {transform_indices = @transform_3, window_bounds = array<i64: 2, 512>}]} {
    %c0 = arith.constant 0 : index
    %c0_0 = arith.constant 0 : index
    %0 = vector.load %arg1[%c0, %c0_0] : memref<2x16xf32, #tpu.memory_space<vmem>>, vector<2x16xf32>
    %c0_1 = arith.constant 0 : index
    %c0_2 = arith.constant 0 : index
    %1 = vector.load %arg2[%c0_1, %c0_2] : memref<64x32xf32, #tpu.memory_space<vmem>>, vector<16x32xf32>
    %c16 = arith.constant 16 : index
    %c0_3 = arith.constant 0 : index
    %2 = vector.load %arg2[%c16, %c0_3] : memref<64x32xf32, #tpu.memory_space<vmem>>, vector<1x32xf32>
    %c24 = arith.constant 24 : index
    %c0_4 = arith.constant 0 : index
    %3 = vector.load %arg2[%c24, %c0_4] : memref<64x32xf32, #tpu.memory_space<vmem>>, vector<32x32xf32>
    %c56 = arith.constant 56 : index
    %c0_5 = arith.constant 0 : index
    %4 = vector.load %arg2[%c56, %c0_5] : memref<64x32xf32, #tpu.memory_space<vmem>>, vector<1x32xf32>
    %cst = arith.constant dense<0.000000e+00> : vector<2x32xf32>
    %5 = tpu.matmul %0, %1, %cst {dimension_numbers = #tpu.dot_dimension_numbers<[1], [0], [0], [1], [0, 0, 1, 1], [], []>} : vector<2x16xf32>, vector<16x32xf32>, vector<2x32xf32> -> vector<2x32xf32>
    %6 = vector.broadcast %2 : vector<1x32xf32> to vector<2x32xf32>
    %7 = arith.addf %5, %6 : vector<2x32xf32>
    %cst_6 = arith.constant 0.000000e+00 : f32
    %8 = vector.broadcast %cst_6 : f32 to vector<2x32xf32>
    %9 = arith.maximumf %7, %8 : vector<2x32xf32>
    %cst_7 = arith.constant dense<0.000000e+00> : vector<2x32xf32>
    %10 = tpu.matmul %9, %3, %cst_7 {dimension_numbers = #tpu.dot_dimension_numbers<[1], [0], [0], [1], [0, 0, 1, 1], [], []>} : vector<2x32xf32>, vector<32x32xf32>, vector<2x32xf32> -> vector<2x32xf32>
    %11 = vector.broadcast %4 : vector<1x32xf32> to vector<2x32xf32>
    %12 = arith.addf %10, %11 : vector<2x32xf32>
    %cst_8 = arith.constant 0.000000e+00 : f32
    %13 = vector.broadcast %cst_8 : f32 to vector<2x32xf32>
    %14 = arith.maximumf %12, %13 : vector<2x32xf32>
    %c0_9 = arith.constant 0 : index
    %c0_10 = arith.constant 0 : index
    %15 = vector.load %arg3[%c0_9, %c0_10] : memref<40x512xf32, #tpu.memory_space<vmem>>, vector<32x256xf32>
    %c32 = arith.constant 32 : index
    %c0_11 = arith.constant 0 : index
    %16 = vector.load %arg3[%c32, %c0_11] : memref<40x512xf32, #tpu.memory_space<vmem>>, vector<1x256xf32>
    %cst_12 = arith.constant dense<0.000000e+00> : vector<2x256xf32>
    %17 = tpu.matmul %14, %15, %cst_12 {dimension_numbers = #tpu.dot_dimension_numbers<[1], [0], [0], [1], [0, 0, 1, 1], [], []>} : vector<2x32xf32>, vector<32x256xf32>, vector<2x256xf32> -> vector<2x256xf32>
    %18 = vector.broadcast %16 : vector<1x256xf32> to vector<2x256xf32>
    %19 = arith.addf %17, %18 : vector<2x256xf32>
    %20 = vector.extract_strided_slice %19 {offsets = [0, 0], sizes = [2, 128], strides = [1, 1]} : vector<2x256xf32> to vector<2x128xf32>
    %cst_13 = arith.constant dense<0xFF800000> : vector<2xf32>
    %21 = vector.multi_reduction <maximumf>, %20, %cst_13 [1] : vector<2x128xf32> to vector<2xf32>
    %22 = vector.shape_cast %21 : vector<2xf32> to vector<2x1xf32>
    %23 = vector.broadcast %22 : vector<2x1xf32> to vector<2x128xf32>
    %24 = arith.subf %20, %23 : vector<2x128xf32>
    %25 = math.exp %24 : vector<2x128xf32>
    %cst_14 = arith.constant dense<0.000000e+00> : vector<2xf32>
    %26 = vector.multi_reduction <add>, %25, %cst_14 [1] : vector<2x128xf32> to vector<2xf32>
    %27 = vector.shape_cast %26 : vector<2xf32> to vector<2x1xf32>
    %28 = tpu.reciprocal %27 {approx = true} : vector<2x1xf32> -> vector<2x1xf32>
    %29 = arith.mulf %27, %28 : vector<2x1xf32>
    %cst_15 = arith.constant 2.000000e+00 : f32
    %30 = vector.broadcast %cst_15 : f32 to vector<2x1xf32>
    %31 = arith.subf %30, %29 : vector<2x1xf32>
    %32 = arith.mulf %28, %31 : vector<2x1xf32>
    %33 = vector.broadcast %32 : vector<2x1xf32> to vector<2x128xf32>
    %34 = arith.mulf %25, %33 : vector<2x128xf32>
    %c0_16 = arith.constant 0 : index
    %c0_17 = arith.constant 0 : index
    %35 = vector.load %arg4[%c0_16, %c0_17] : memref<2x512xf32, #tpu.memory_space<vmem>>, vector<2x128xf32>
    tpu.vector_store %arg4[%c0_16, %c0_17], %34 {strides = array<i32>} : memref<2x512xf32, #tpu.memory_space<vmem>>, vector<2x128xf32>,
    %36 = vector.extract_strided_slice %19 {offsets = [0, 128], sizes = [2, 128], strides = [1, 1]} : vector<2x256xf32> to vector<2x128xf32>
    %cst_18 = arith.constant dense<0xFF800000> : vector<2xf32>
    %37 = vector.multi_reduction <maximumf>, %36, %cst_18 [1] : vector<2x128xf32> to vector<2xf32>
    %38 = vector.shape_cast %37 : vector<2xf32> to vector<2x1xf32>
    %39 = vector.broadcast %38 : vector<2x1xf32> to vector<2x128xf32>
    %40 = arith.subf %36, %39 : vector<2x128xf32>
    %41 = math.exp %40 : vector<2x128xf32>
    %cst_19 = arith.constant dense<0.000000e+00> : vector<2xf32>
    %42 = vector.multi_reduction <add>, %41, %cst_19 [1] : vector<2x128xf32> to vector<2xf32>
    %43 = vector.shape_cast %42 : vector<2xf32> to vector<2x1xf32>
    %44 = tpu.reciprocal %43 {approx = true} : vector<2x1xf32> -> vector<2x1xf32>
    %45 = arith.mulf %43, %44 : vector<2x1xf32>
    %cst_20 = arith.constant 2.000000e+00 : f32
    %46 = vector.broadcast %cst_20 : f32 to vector<2x1xf32>
    %47 = arith.subf %46, %45 : vector<2x1xf32>
    %48 = arith.mulf %44, %47 : vector<2x1xf32>
    %49 = vector.broadcast %48 : vector<2x1xf32> to vector<2x128xf32>
    %50 = arith.mulf %41, %49 : vector<2x128xf32>
    %c0_21 = arith.constant 0 : index
    %c128 = arith.constant 128 : index
    %51 = vector.load %arg4[%c0_21, %c128] : memref<2x512xf32, #tpu.memory_space<vmem>>, vector<2x128xf32>
    tpu.vector_store %arg4[%c0_21, %c128], %50 {strides = array<i32>} : memref<2x512xf32, #tpu.memory_space<vmem>>, vector<2x128xf32>,
    %c0_22 = arith.constant 0 : index
    %c256 = arith.constant 256 : index
    %52 = vector.load %arg3[%c0_22, %c256] : memref<40x512xf32, #tpu.memory_space<vmem>>, vector<32x256xf32>
    %c32_23 = arith.constant 32 : index
    %c256_24 = arith.constant 256 : index
    %53 = vector.load %arg3[%c32_23, %c256_24] : memref<40x512xf32, #tpu.memory_space<vmem>>, vector<1x256xf32>
    %cst_25 = arith.constant dense<0.000000e+00> : vector<2x256xf32>
    %54 = tpu.matmul %14, %52, %cst_25 {dimension_numbers = #tpu.dot_dimension_numbers<[1], [0], [0], [1], [0, 0, 1, 1], [], []>} : vector<2x32xf32>, vector<32x256xf32>, vector<2x256xf32> -> vector<2x256xf32>
    %55 = vector.broadcast %53 : vector<1x256xf32> to vector<2x256xf32>
    %56 = arith.addf %54, %55 : vector<2x256xf32>
    %57 = vector.extract_strided_slice %56 {offsets = [0, 0], sizes = [2, 128], strides = [1, 1]} : vector<2x256xf32> to vector<2x128xf32>
    %cst_26 = arith.constant dense<0xFF800000> : vector<2xf32>
    %58 = vector.multi_reduction <maximumf>, %57, %cst_26 [1] : vector<2x128xf32> to vector<2xf32>
    %59 = vector.shape_cast %58 : vector<2xf32> to vector<2x1xf32>
    %60 = vector.broadcast %59 : vector<2x1xf32> to vector<2x128xf32>
    %61 = arith.subf %57, %60 : vector<2x128xf32>
    %62 = math.exp %61 : vector<2x128xf32>
    %cst_27 = arith.constant dense<0.000000e+00> : vector<2xf32>
    %63 = vector.multi_reduction <add>, %62, %cst_27 [1] : vector<2x128xf32> to vector<2xf32>
    %64 = vector.shape_cast %63 : vector<2xf32> to vector<2x1xf32>
    %65 = tpu.reciprocal %64 {approx = true} : vector<2x1xf32> -> vector<2x1xf32>
    %66 = arith.mulf %64, %65 : vector<2x1xf32>
    %cst_28 = arith.constant 2.000000e+00 : f32
    %67 = vector.broadcast %cst_28 : f32 to vector<2x1xf32>
    %68 = arith.subf %67, %66 : vector<2x1xf32>
    %69 = arith.mulf %65, %68 : vector<2x1xf32>
    %70 = vector.broadcast %69 : vector<2x1xf32> to vector<2x128xf32>
    %71 = arith.mulf %62, %70 : vector<2x128xf32>
    %c0_29 = arith.constant 0 : index
    %c256_30 = arith.constant 256 : index
    %72 = vector.load %arg4[%c0_29, %c256_30] : memref<2x512xf32, #tpu.memory_space<vmem>>, vector<2x128xf32>
    tpu.vector_store %arg4[%c0_29, %c256_30], %71 {strides = array<i32>} : memref<2x512xf32, #tpu.memory_space<vmem>>, vector<2x128xf32>,
    %73 = vector.extract_strided_slice %56 {offsets = [0, 128], sizes = [2, 128], strides = [1, 1]} : vector<2x256xf32> to vector<2x128xf32>
    %cst_31 = arith.constant dense<0xFF800000> : vector<2xf32>
    %74 = vector.multi_reduction <maximumf>, %73, %cst_31 [1] : vector<2x128xf32> to vector<2xf32>
    %75 = vector.shape_cast %74 : vector<2xf32> to vector<2x1xf32>
    %76 = vector.broadcast %75 : vector<2x1xf32> to vector<2x128xf32>
    %77 = arith.subf %73, %76 : vector<2x128xf32>
    %78 = math.exp %77 : vector<2x128xf32>
    %cst_32 = arith.constant dense<0.000000e+00> : vector<2xf32>
    %79 = vector.multi_reduction <add>, %78, %cst_32 [1] : vector<2x128xf32> to vector<2xf32>
    %80 = vector.shape_cast %79 : vector<2xf32> to vector<2x1xf32>
    %81 = tpu.reciprocal %80 {approx = true} : vector<2x1xf32> -> vector<2x1xf32>
    %82 = arith.mulf %80, %81 : vector<2x1xf32>
    %cst_33 = arith.constant 2.000000e+00 : f32
    %83 = vector.broadcast %cst_33 : f32 to vector<2x1xf32>
    %84 = arith.subf %83, %82 : vector<2x1xf32>
    %85 = arith.mulf %81, %84 : vector<2x1xf32>
    %86 = vector.broadcast %85 : vector<2x1xf32> to vector<2x128xf32>
    %87 = arith.mulf %78, %86 : vector<2x128xf32>
    %c0_34 = arith.constant 0 : index
    %c384 = arith.constant 384 : index
    %88 = vector.load %arg4[%c0_34, %c384] : memref<2x512xf32, #tpu.memory_space<vmem>>, vector<2x128xf32>
    tpu.vector_store %arg4[%c0_34, %c384], %87 {strides = array<i32>} : memref<2x512xf32, #tpu.memory_space<vmem>>, vector<2x128xf32>,
    return
  }
  func.func @transform_0(%arg0: i32) -> (i32, i32) {
    %c0_i32 = arith.constant 0 : i32
    %c0_i32_0 = arith.constant 0 : i32
    return %arg0, %c0_i32 : i32, i32
  }
  func.func @transform_1(%arg0: i32) -> (i32, i32) {
    %c0_i32 = arith.constant 0 : i32
    %c0_i32_0 = arith.constant 0 : i32
    %c0_i32_1 = arith.constant 0 : i32
    return %c0_i32, %c0_i32_0 : i32, i32
  }
  func.func @transform_2(%arg0: i32) -> (i32, i32) {
    %c0_i32 = arith.constant 0 : i32
    %c0_i32_0 = arith.constant 0 : i32
    %c0_i32_1 = arith.constant 0 : i32
    return %c0_i32, %c0_i32_0 : i32, i32
  }
  func.func @transform_3(%arg0: i32) -> (i32, i32) {
    %c0_i32 = arith.constant 0 : i32
    %c0_i32_0 = arith.constant 0 : i32
    return %arg0, %c0_i32 : i32, i32
  }
}

</mosaic_0001>

<llo_original>
// kernel: tpu_custom_call.1
$region0: #{tpu_custom_call.1}
  #allocation0 [shape = 'u32[]', space=smem, size = 0x4, offset = 0x4, fixed_abs, tag = 'smem constant byte address 0x4 - core index']
  #allocation1 [shape = 'u32[144,128]{1,0:T(1,128)}', space=vmem, size = 0x12000, scoped, tag = 'internal scratch']
  %s0 = inlined_call_operand.vmem [shape: f32[2,16], index: 0, kind: input, shape index: {}]
  %s1 = inlined_call_operand.vmem [shape: f32[64,32], index: 1, kind: input, shape index: {}]
  %s2 = inlined_call_operand.hbm [shape: f32[40,512], index: 2, kind: input, shape index: {}]
  %s3 = inlined_call_operand.hbm [shape: f32[2,512], index: 3, kind: output, shape index: {}]
  %s4 = sld [smem:[#allocation0]]
  $region26: #{tpu_custom_call.1} parent=0
    _
  %s6 = ssub.s32 1, %s4
  %s7 = scalar_select 0, %s6, %s4
  $region1: #{tpu_custom_call.1} parent=0
    #allocation2 [shape = 'u8[81920]{0}', space=vmem, size = 0x14000, scoped, tag = 'input window, operand 2, single buffered']
    #allocation3 [shape = 's32[1]{0}', space=sflag, size = 0x4, scoped, tag = 'scoped memory for tpu_custom_call.1']
    #allocation4 [shape = 's32[1]{0}', space=sflag, size = 0x4, scoped, tag = 'scoped memory for tpu_custom_call.1']
    #allocation5 [shape = 'u8[4096]{0}', space=vmem, size = 0x1000, scoped, tag = 'output window, operand 0, single buffered']
    %8 = vsyncpa [#allocation3], 0
    %9 = vsyncpa [#allocation4], 0
    // Predicated region
    $region2: #{tpu_custom_call.1} parent=1 // pred_check
      _
    $region3: #{tpu_custom_call.1} parent=1 // pred_check_branch
      %11 = sbr.rel (0) target = $region5
    $region4: #{tpu_custom_call.1} parent=1 // pred_region
      _
    $region5: #{tpu_custom_call.1} parent=1 // pred_fallthru
      _
    // Predicated region
    $region6: #{tpu_custom_call.1} parent=1 // pred_check
      _
    $region7: #{tpu_custom_call.1} parent=1 // pred_check_branch
      %13 = sbr.rel (0) target = $region9
    $region8: #{tpu_custom_call.1} parent=1 // pred_region
      _
    $region9: #{tpu_custom_call.1} parent=1 // pred_fallthru
      _
    // Predicated region
    $region10: #{tpu_custom_call.1} parent=1 // pred_check
      _
    $region11: #{tpu_custom_call.1} parent=1 // pred_check_branch
      %15 = sbr.rel (0) target = $region13
    $region12: #{tpu_custom_call.1} parent=1 // pred_region
      %s17 = ssub.s32 2560, 2560
      %18 = vsyncadd [#allocation3], %s17
      %s19 = sshll.u32 [#allocation2], 4
      %s20 = int_to_ptr.vmem [resolvable:$true] %s19
      %25 = dma.hbm_to_vmem [thread:$0]  %s2, 2560, %s20, [#allocation3], 512, 512, 32
    $region13: #{tpu_custom_call.1} parent=1 // pred_fallthru
      _
    // Predicated region
    $region14: #{tpu_custom_call.1} parent=1 // pred_check
      _
    $region15: #{tpu_custom_call.1} parent=1 // pred_check_branch
      %27 = sbr.rel (0) target = $region17
    $region16: #{tpu_custom_call.1} parent=1 // pred_region
      %28 = dma.done [#allocation3], 2560
    $region17: #{tpu_custom_call.1} parent=1 // pred_fallthru
      _
    %v29 = vld [vmem:[%s0] sm:$0x3]
    %v30 = vld [vmem:[%s1] sm:$0xff]
    %v31 = vld [vmem:[%s1 + $0x8] sm:$0xff]
    %v32 = vld [vmem:[%s1 + $0x10] sm:$0x1]
    %v33 = vld [vmem:[%s1 + $0x18] sm:$0xff]
    %v34 = vld [vmem:[%s1 + $0x20] sm:$0xff]
    %v35 = vld [vmem:[%s1 + $0x28] sm:$0xff]
    %v36 = vld [vmem:[%s1 + $0x30] sm:$0xff]
    %v37 = vld [vmem:[%s1 + $0x38] sm:$0x1]
    %v38 = vlaneseq
    %v39 = vshrl.u32 %v38, 7
    %v40 = vsub.s32 0, %v39
    %v41 = vrot.slane %v32, %v40
    %vm42 = vcmask 130048
    %v44 = vsel %vm42, %v29, 0
    %46 = vmatprep.subr.mxu0 0.0
    %47 = vmatpush1.msra.mxu0 %v30
    %48 = vmatprep.subr.mxu0 0.0
    %49 = vmatpush1.msra.mxu0 %v31
    %50 = vmatprep.subr.mxu0 0.0
    %51 = vmatpush1.msra.mxu0 0.0
    %52 = vmatprep.subr.mxu0 0.0
    %53 = vmatpush1.msra.mxu0 0.0
    %54 = vmatprep.subr.mxu0 0.0
    %55 = vmatpush1.msra.mxu0 0.0
    %56 = vmatprep.subr.mxu0 0.0
    %57 = vmatpush1.msra.mxu0 0.0
    %58 = vmatprep.subr.mxu0 0.0
    %59 = vmatpush1.msra.mxu0 0.0
    %60 = vmatprep.subr.mxu0 0.0
    %61 = vmatpush1.msra.mxu0 0.0
    %62 = vmatprep.subr.mxu0 0.0
    %63 = vmatpush1.msra.mxu0 0.0
    %64 = vmatprep.subr.mxu0 0.0
    %65 = vmatpush1.msra.mxu0 0.0
    %66 = vmatprep.subr.mxu0 0.0
    %67 = vmatpush1.msra.mxu0 0.0
    %68 = vmatprep.subr.mxu0 0.0
    %69 = vmatpush1.msra.mxu0 0.0
    %70 = vmatprep.subr.mxu0 0.0
    %71 = vmatpush1.msra.mxu0 0.0
    %72 = vmatprep.subr.mxu0 0.0
    %73 = vmatpush1.msra.mxu0 0.0
    %74 = vmatprep.subr.mxu0 0.0
    %75 = vmatpush1.msra.mxu0 0.0
    %76 = vmatprep.subr.mxu0 0.0
    %77 = vmatpush1.msra.mxu0 0.0
    %78 = vmatprep.subr.mxu0 0.0
    %79 = vmatpush1.msra.mxu0 0.0
    %80 = vmatprep.subr.mxu0 0.0
    %81 = vmatpush1.msra.mxu0 0.0
    %82 = vmatprep.subr.mxu0 0.0
    %83 = vmatpush1.msra.mxu0 0.0
    %84 = vmatprep.subr.mxu0 0.0
    %85 = vmatpush1.msra.mxu0 0.0
    %86 = vmatprep.subr.mxu0 0.0
    %87 = vmatpush1.msra.mxu0 0.0
    %88 = vmatprep.subr.mxu0 0.0
    %89 = vmatpush1.msra.mxu0 0.0
    %90 = vmatprep.subr.mxu0 0.0
    %91 = vmatpush1.msra.mxu0 0.0
    %92 = vmatprep.subr.mxu0 0.0
    %93 = vmatpush1.msra.mxu0 0.0
    %94 = vmatprep.subr.mxu0 0.0
    %95 = vmatpush1.msra.mxu0 0.0
    %96 = vmatprep.subr.mxu0 0.0
    %97 = vmatpush1.msra.mxu0 0.0
    %98 = vmatprep.subr.mxu0 0.0
    %99 = vmatpush1.msra.mxu0 0.0
    %100 = vmatprep.subr.mxu0 0.0
    %101 = vmatpush1.msra.mxu0 0.0
    %102 = vmatprep.subr.mxu0 0.0
    %103 = vmatpush1.msra.mxu0 0.0
    %104 = vmatprep.subr.mxu0 0.0
    %105 = vmatpush1.msra.mxu0 0.0
    %106 = vmatprep.subr.mxu0 0.0
    %107 = vmatpush1.msra.mxu0 0.0
    %108 = vmatprep.subr.mxu0 0.0
    %109 = vmatpush1.msra.mxu0 0.0
    %110 = vmatprep.mubr.f32.mxu0 0.0
    %111 = vmatmul.mubr.f32.gmra.mrb[0].mxu0 %v44
    %v112 = vpop.f32.mrb[0].mxu0
    %v113 = vadd.f32 %v41, %v112
    %v114 = vpop.f32.mrb[0].mxu0
    %115 = vdwg.mxu0
    %v116 = vmax.f32 %v113, 0.0
    %v117 = vlaneseq
    %v118 = vshrl.u32 %v117, 7
    %v119 = vsub.s32 0, %v118
    %v120 = vrot.slane %v37, %v119
    %vm121 = vcmask 261120
    %v123 = vsel %vm121, %v116, 0
    %125 = vmatprep.subr.mxu0 0.0
    %126 = vmatpush1.msra.mxu0 %v33
    %127 = vmatprep.subr.mxu0 0.0
    %128 = vmatpush1.msra.mxu0 %v34
    %129 = vmatprep.subr.mxu0 0.0
    %130 = vmatpush1.msra.mxu0 %v35
    %131 = vmatprep.subr.mxu0 0.0
    %132 = vmatpush1.msra.mxu0 %v36
    %133 = vmatprep.subr.mxu0 0.0
    %134 = vmatpush1.msra.mxu0 0.0
    %135 = vmatprep.subr.mxu0 0.0
    %136 = vmatpush1.msra.mxu0 0.0
    %137 = vmatprep.subr.mxu0 0.0
    %138 = vmatpush1.msra.mxu0 0.0
    %139 = vmatprep.subr.mxu0 0.0
    %140 = vmatpush1.msra.mxu0 0.0
    %141 = vmatprep.subr.mxu0 0.0
    %142 = vmatpush1.msra.mxu0 0.0
    %143 = vmatprep.subr.mxu0 0.0
    %144 = vmatpush1.msra.mxu0 0.0
    %145 = vmatprep.subr.mxu0 0.0
    %146 = vmatpush1.msra.mxu0 0.0
    %147 = vmatprep.subr.mxu0 0.0
    %148 = vmatpush1.msra.mxu0 0.0
    %149 = vmatprep.subr.mxu0 0.0
    %150 = vmatpush1.msra.mxu0 0.0
    %151 = vmatprep.subr.mxu0 0.0
    %152 = vmatpush1.msra.mxu0 0.0
    %153 = vmatprep.subr.mxu0 0.0
    %154 = vmatpush1.msra.mxu0 0.0
    %155 = vmatprep.subr.mxu0 0.0
    %156 = vmatpush1.msra.mxu0 0.0
    %157 = vmatprep.subr.mxu0 0.0
    %158 = vmatpush1.msra.mxu0 0.0
    %159 = vmatprep.subr.mxu0 0.0
    %160 = vmatpush1.msra.mxu0 0.0
    %161 = vmatprep.subr.mxu0 0.0
    %162 = vmatpush1.msra.mxu0 0.0
    %163 = vmatprep.subr.mxu0 0.0
    %164 = vmatpush1.msra.mxu0 0.0
    %165 = vmatprep.subr.mxu0 0.0
    %166 = vmatpush1.msra.mxu0 0.0
    %167 = vmatprep.subr.mxu0 0.0
    %168 = vmatpush1.msra.mxu0 0.0
    %169 = vmatprep.subr.mxu0 0.0
    %170 = vmatpush1.msra.mxu0 0.0
    %171 = vmatprep.subr.mxu0 0.0
    %172 = vmatpush1.msra.mxu0 0.0
    %173 = vmatprep.subr.mxu0 0.0
    %174 = vmatpush1.msra.mxu0 0.0
    %175 = vmatprep.subr.mxu0 0.0
    %176 = vmatpush1.msra.mxu0 0.0
    %177 = vmatprep.subr.mxu0 0.0
    %178 = vmatpush1.msra.mxu0 0.0
    %179 = vmatprep.subr.mxu0 0.0
    %180 = vmatpush1.msra.mxu0 0.0
    %181 = vmatprep.subr.mxu0 0.0
    %182 = vmatpush1.msra.mxu0 0.0
    %183 = vmatprep.subr.mxu0 0.0
    %184 = vmatpush1.msra.mxu0 0.0
    %185 = vmatprep.subr.mxu0 0.0
    %186 = vmatpush1.msra.mxu0 0.0
    %187 = vmatprep.subr.mxu0 0.0
    %188 = vmatpush1.msra.mxu0 0.0
    %189 = vmatprep.mubr.f32.mxu0 0.0
    %190 = vmatmul.mubr.f32.gmra.mrb[0].mxu0 %v123
    %v191 = vpop.f32.mrb[0].mxu0
    %v192 = vadd.f32 %v120, %v191
    %v193 = vpop.f32.mrb[0].mxu0
    %194 = vdwg.mxu0
    %v195 = vmax.f32 %v192, 0.0
    %v196 = vld [vmem:[#allocation2] sm:$0xff]
    %v197 = vld [vmem:[#allocation2 + $0x8] sm:$0xff]
    %v198 = vld [vmem:[#allocation2 + $0x20] sm:$0xff]
    %v199 = vld [vmem:[#allocation2 + $0x28] sm:$0xff]
    %v200 = vld [vmem:[#allocation2 + $0x40] sm:$0xff]
    %v201 = vld [vmem:[#allocation2 + $0x48] sm:$0xff]
    %v202 = vld [vmem:[#allocation2 + $0x60] sm:$0xff]
    %v203 = vld [vmem:[#allocation2 + $0x68] sm:$0xff]
    %s204 = scalar_lea.vmem [#allocation2], 128
    %v205 = vld [vmem:[%s204] ss:$8 sm:$0x3]
    %v207 = vlaneseq
    %v208 = vshrl.u32 %v207, 7
    %v209 = vsub.s32 0, %v208
    %v210 = vrot.slane %v205, %v209
    %v211 = vlaneseq
    %v212 = vshrl.u32 %v211, 7
    %v213 = vsub.s32 1, %v212
    %v214 = vrot.slane %v205, %v213
    %v218 = vsel %vm121, %v195, 0
    %220 = vmatprep.subr.mxu0 %v197
    %221 = vmatpush1.msra.mxu0 %v196
    %222 = vmatprep.subr.mxu0 %v199
    %223 = vmatpush1.msra.mxu0 %v198
    %224 = vmatprep.subr.mxu0 %v201
    %225 = vmatpush1.msra.mxu0 %v200
    %226 = vmatprep.subr.mxu0 %v203
    %227 = vmatpush1.msra.mxu0 %v202
    %228 = vmatprep.subr.mxu0 0.0
    %229 = vmatpush1.msra.mxu0 0.0
    %230 = vmatprep.subr.mxu0 0.0
    %231 = vmatpush1.msra.mxu0 0.0
    %232 = vmatprep.subr.mxu0 0.0
    %233 = vmatpush1.msra.mxu0 0.0
    %234 = vmatprep.subr.mxu0 0.0
    %235 = vmatpush1.msra.mxu0 0.0
    %236 = vmatprep.subr.mxu0 0.0
    %237 = vmatpush1.msra.mxu0 0.0
    %238 = vmatprep.subr.mxu0 0.0
    %239 = vmatpush1.msra.mxu0 0.0
    %240 = vmatprep.subr.mxu0 0.0
    %241 = vmatpush1.msra.mxu0 0.0
    %242 = vmatprep.subr.mxu0 0.0
    %243 = vmatpush1.msra.mxu0 0.0
    %244 = vmatprep.subr.mxu0 0.0
    %245 = vmatpush1.msra.mxu0 0.0
    %246 = vmatprep.subr.mxu0 0.0
    %247 = vmatpush1.msra.mxu0 0.0
    %248 = vmatprep.subr.mxu0 0.0
    %249 = vmatpush1.msra.mxu0 0.0
    %250 = vmatprep.subr.mxu0 0.0
    %251 = vmatpush1.msra.mxu0 0.0
    %252 = vmatprep.subr.mxu0 0.0
    %253 = vmatpush1.msra.mxu0 0.0
    %254 = vmatprep.subr.mxu0 0.0
    %255 = vmatpush1.msra.mxu0 0.0
    %256 = vmatprep.subr.mxu0 0.0
    %257 = vmatpush1.msra.mxu0 0.0
    %258 = vmatprep.subr.mxu0 0.0
    %259 = vmatpush1.msra.mxu0 0.0
    %260 = vmatprep.subr.mxu0 0.0
    %261 = vmatpush1.msra.mxu0 0.0
    %262 = vmatprep.subr.mxu0 0.0
    %263 = vmatpush1.msra.mxu0 0.0
    %264 = vmatprep.subr.mxu0 0.0
    %265 = vmatpush1.msra.mxu0 0.0
    %266 = vmatprep.subr.mxu0 0.0
    %267 = vmatpush1.msra.mxu0 0.0
    %268 = vmatprep.subr.mxu0 0.0
    %269 = vmatpush1.msra.mxu0 0.0
    %270 = vmatprep.subr.mxu0 0.0
    %271 = vmatpush1.msra.mxu0 0.0
    %272 = vmatprep.subr.mxu0 0.0
    %273 = vmatpush1.msra.mxu0 0.0
    %274 = vmatprep.subr.mxu0 0.0
    %275 = vmatpush1.msra.mxu0 0.0
    %276 = vmatprep.subr.mxu0 0.0
    %277 = vmatpush1.msra.mxu0 0.0
    %278 = vmatprep.subr.mxu0 0.0
    %279 = vmatpush1.msra.mxu0 0.0
    %280 = vmatprep.subr.mxu0 0.0
    %281 = vmatpush1.msra.mxu0 0.0
    %282 = vmatprep.subr.mxu0 0.0
    %283 = vmatpush1.msra.mxu0 0.0
    %284 = vmatprep.mubr.f32.mxu0 0.0
    %285 = vmatmul.mubr.f32.gmra.mrb[0].mxu0 %v218
    %v286 = vpop.f32.mrb[0].mxu0
    %v287 = vadd.f32 %v210, %v286
    %v288 = vpop.f32.mrb[0].mxu0
    %v289 = vadd.f32 %v214, %v288
    %290 = vdwg.mxu0
    %vm291 = vcmask 1041408
    %v292 = vsel %vm291, %v287, -inf
    %293 = vmax.xlane.f32.xlu0 %v292
    %v294 = vpop.xlane.xlu0 %293
    %v295 = vsub.f32 %v287, %v294
    %v296 = vmul.f32 %v295, 1.442695
    %v297 = vpow.pop %v296
    %v298 = vsel %vm291, %v297, 0.0
    %299 = vadd.xlane.f32.xlu0 %v298
    %v300 = vpop.xlane.xlu0 %299
    %v301 = vrcp.pop %v300
    %v302 = vmul.f32 %v300, %v301
    %v303 = vsub.f32 2.0, %v302
    %v304 = vmul.f32 %v301, %v303
    %v305 = vmul.f32 %v297, %v304
    %306 = vst [vmem:[#allocation5] sm:$0x3] %v305
    %v307 = vsel %vm291, %v289, -inf
    %308 = vmax.xlane.f32.xlu0 %v307
    %v309 = vpop.xlane.xlu0 %308
    %v310 = vsub.f32 %v289, %v309
    %v311 = vmul.f32 %v310, 1.442695
    %v312 = vpow.pop %v311
    %v313 = vsel %vm291, %v312, 0.0
    %314 = vadd.xlane.f32.xlu0 %v313
    %v315 = vpop.xlane.xlu0 %314
    %v316 = vrcp.pop %v315
    %v317 = vmul.f32 %v315, %v316
    %v318 = vsub.f32 2.0, %v317
    %v319 = vmul.f32 %v316, %v318
    %v320 = vmul.f32 %v312, %v319
    %321 = vst [vmem:[#allocation5 + $0x2] sm:$0x3] %v320
    %v322 = vld [vmem:[#allocation2 + $0x10] sm:$0xff]
    %v323 = vld [vmem:[#allocation2 + $0x18] sm:$0xff]
    %v324 = vld [vmem:[#allocation2 + $0x30] sm:$0xff]
    %v325 = vld [vmem:[#allocation2 + $0x38] sm:$0xff]
    %v326 = vld [vmem:[#allocation2 + $0x50] sm:$0xff]
    %v327 = vld [vmem:[#allocation2 + $0x58] sm:$0xff]
    %v328 = vld [vmem:[#allocation2 + $0x70] sm:$0xff]
    %v329 = vld [vmem:[#allocation2 + $0x78] sm:$0xff]
    %s330 = scalar_lea.vmem [#allocation2], 144
    %v331 = vld [vmem:[%s330] ss:$8 sm:$0x3]
    %v333 = vlaneseq
    %v334 = vshrl.u32 %v333, 7
    %v335 = vsub.s32 0, %v334
    %v336 = vrot.slane %v331, %v335
    %v337 = vlaneseq
    %v338 = vshrl.u32 %v337, 7
    %v339 = vsub.s32 1, %v338
    %v340 = vrot.slane %v331, %v339
    %343 = vmatprep.subr.mxu0 %v323
    %344 = vmatpush1.msra.mxu0 %v322
    %345 = vmatprep.subr.mxu0 %v325
    %346 = vmatpush1.msra.mxu0 %v324
    %347 = vmatprep.subr.mxu0 %v327
    %348 = vmatpush1.msra.mxu0 %v326
    %349 = vmatprep.subr.mxu0 %v329
    %350 = vmatpush1.msra.mxu0 %v328
    %351 = vmatprep.subr.mxu0 0.0
    %352 = vmatpush1.msra.mxu0 0.0
    %353 = vmatprep.subr.mxu0 0.0
    %354 = vmatpush1.msra.mxu0 0.0
    %355 = vmatprep.subr.mxu0 0.0
    %356 = vmatpush1.msra.mxu0 0.0
    %357 = vmatprep.subr.mxu0 0.0
    %358 = vmatpush1.msra.mxu0 0.0
    %359 = vmatprep.subr.mxu0 0.0
    %360 = vmatpush1.msra.mxu0 0.0
    %361 = vmatprep.subr.mxu0 0.0
    %362 = vmatpush1.msra.mxu0 0.0
    %363 = vmatprep.subr.mxu0 0.0
    %364 = vmatpush1.msra.mxu0 0.0
    %365 = vmatprep.subr.mxu0 0.0
    %366 = vmatpush1.msra.mxu0 0.0
    %367 = vmatprep.subr.mxu0 0.0
    %368 = vmatpush1.msra.mxu0 0.0
    %369 = vmatprep.subr.mxu0 0.0
    %370 = vmatpush1.msra.mxu0 0.0
    %371 = vmatprep.subr.mxu0 0.0
    %372 = vmatpush1.msra.mxu0 0.0
    %373 = vmatprep.subr.mxu0 0.0
    %374 = vmatpush1.msra.mxu0 0.0
    %375 = vmatprep.subr.mxu0 0.0
    %376 = vmatpush1.msra.mxu0 0.0
    %377 = vmatprep.subr.mxu0 0.0
    %378 = vmatpush1.msra.mxu0 0.0
    %379 = vmatprep.subr.mxu0 0.0
    %380 = vmatpush1.msra.mxu0 0.0
    %381 = vmatprep.subr.mxu0 0.0
    %382 = vmatpush1.msra.mxu0 0.0
    %383 = vmatprep.subr.mxu0 0.0
    %384 = vmatpush1.msra.mxu0 0.0
    %385 = vmatprep.subr.mxu0 0.0
    %386 = vmatpush1.msra.mxu0 0.0
    %387 = vmatprep.subr.mxu0 0.0
    %388 = vmatpush1.msra.mxu0 0.0
    %389 = vmatprep.subr.mxu0 0.0
    %390 = vmatpush1.msra.mxu0 0.0
    %391 = vmatprep.subr.mxu0 0.0
    %392 = vmatpush1.msra.mxu0 0.0
    %393 = vmatprep.subr.mxu0 0.0
    %394 = vmatpush1.msra.mxu0 0.0
    %395 = vmatprep.subr.mxu0 0.0
    %396 = vmatpush1.msra.mxu0 0.0
    %397 = vmatprep.subr.mxu0 0.0
    %398 = vmatpush1.msra.mxu0 0.0
    %399 = vmatprep.subr.mxu0 0.0
    %400 = vmatpush1.msra.mxu0 0.0
    %401 = vmatprep.subr.mxu0 0.0
    %402 = vmatpush1.msra.mxu0 0.0
    %403 = vmatprep.subr.mxu0 0.0
    %404 = vmatpush1.msra.mxu0 0.0
    %405 = vmatprep.subr.mxu0 0.0
    %406 = vmatpush1.msra.mxu0 0.0
    %407 = vmatprep.mubr.f32.mxu0 0.0
    %408 = vmatmul.mubr.f32.gmra.mrb[0].mxu0 %v218
    %v409 = vpop.f32.mrb[0].mxu0
    %v410 = vadd.f32 %v336, %v409
    %v411 = vpop.f32.mrb[0].mxu0
    %v412 = vadd.f32 %v340, %v411
    %413 = vdwg.mxu0
    %v414 = vsel %vm291, %v410, -inf
    %415 = vmax.xlane.f32.xlu0 %v414
    %v416 = vpop.xlane.xlu0 %415
    %v417 = vsub.f32 %v410, %v416
    %v418 = vmul.f32 %v417, 1.442695
    %v419 = vpow.pop %v418
    %v420 = vsel %vm291, %v419, 0.0
    %421 = vadd.xlane.f32.xlu0 %v420
    %v422 = vpop.xlane.xlu0 %421
    %v423 = vrcp.pop %v422
    %v424 = vmul.f32 %v422, %v423
    %v425 = vsub.f32 2.0, %v424
    %v426 = vmul.f32 %v423, %v425
    %v427 = vmul.f32 %v419, %v426
    %428 = vst [vmem:[#allocation5 + $0x4] sm:$0x3] %v427
    %v429 = vsel %vm291, %v412, -inf
    %430 = vmax.xlane.f32.xlu0 %v429
    %v431 = vpop.xlane.xlu0 %430
    %v432 = vsub.f32 %v412, %v431
    %v433 = vmul.f32 %v432, 1.442695
    %v434 = vpow.pop %v433
    %v435 = vsel %vm291, %v434, 0.0
    %436 = vadd.xlane.f32.xlu0 %v435
    %v437 = vpop.xlane.xlu0 %436
    %v438 = vrcp.pop %v437
    %v439 = vmul.f32 %v437, %v438
    %v440 = vsub.f32 2.0, %v439
    %v441 = vmul.f32 %v438, %v440
    %v442 = vmul.f32 %v434, %v441
    %443 = vst [vmem:[#allocation5 + $0x6] sm:$0x3] %v442
    // Predicated region
    $region18: #{tpu_custom_call.1} parent=1 // pred_check
      _
    $region19: #{tpu_custom_call.1} parent=1 // pred_check_branch
      %445 = sbr.rel (0) target = $region21
    $region20: #{tpu_custom_call.1} parent=1 // pred_region
      %s447 = ssub.s32 128, 128
      %448 = vsyncadd [#allocation4], %s447
      %s450 = sshll.u32 [#allocation5], 4
      %s451 = int_to_ptr.vmem [resolvable:$true] %s450
      %453 = dma.vmem_to_hbm [thread:$0]  %s451, 128, %s3, [#allocation4]
    $region21: #{tpu_custom_call.1} parent=1 // pred_fallthru
      _
    // Predicated region
    $region22: #{tpu_custom_call.1} parent=1 // pred_check
      _
    $region23: #{tpu_custom_call.1} parent=1 // pred_check_branch
      %455 = sbr.rel (0) target = $region25
    $region24: #{tpu_custom_call.1} parent=1 // pred_region
      %456 = dma.done [#allocation4], 128
    $region25: #{tpu_custom_call.1} parent=1 // pred_fallthru
      _
    %457 = vsyncpa [#allocation3], 1
    %458 = vsyncpa [#allocation4], 1

</llo_original>
